<compile_context>
chip_gen: v5e
topology: v5e:2x2
jax: 0.10.0
libtpu: 0.0.40
codegen_flags: <defaults>
</compile_context>

<pallas_src>
import functools
import math

import jax
import jax.numpy as jnp
from jax.experimental import pallas as pl
from jax.experimental.pallas import tpu as pltpu

NUM_HEADS = 4


def _round_up(x, m):
    return ((x + m - 1) // m) * m


def attention_block_kernel(x_ref, wqkv_ref, bqkv_ref, wo_ref, bo_ref, o_ref,
                           o_acc_ref, *, heads, seq_len):
    """One grid step processes rows = tb * seq_len flattened (batch, seq) rows.

    x_ref    : (rows, C)   activations (compute dtype, bf16 by default)
    wqkv_ref : (C, NQ)     fused (to_qkv o in_proj) weight, cols [q | k | v | 0-pad];
                           q columns pre-scaled by 1/sqrt(d)
    bqkv_ref : (1, NQ)     fused qkv bias (f32)
    wo_ref   : (C, CP)     out_proj weight (lane-padded columns)
    bo_ref   : (1, CP)     out_proj bias (f32)
    o_ref    : (rows, CP)  lane-dense output slab
    o_acc_ref: (rows, C)   f32 scratch for assembling per-head attention outputs
    """
    rows, C = x_ref.shape
    H = heads
    L = seq_len
    d = C // H
    tb = rows // L

    # --- QKV projection: one lane-dense 2-D MXU matmul (K=C, N=3C) ----------
    qkv = jnp.dot(x_ref[...], wqkv_ref[...],
                  preferred_element_type=jnp.float32) + bqkv_ref[...]   # (rows, NQ) f32

    # (rows, *) -> (tb, L, *): attention is block-diagonal over the tb batch
    # elements in this block; no (rows, rows) scores and no segment mask.
    q = qkv[:, :C].reshape(tb, L, C)            # 1/sqrt(d) already folded into Wq/bq
    k = qkv[:, C:2 * C].reshape(tb, L, C)
    v = qkv[:, 2 * C:3 * C].reshape(tb, L, C)

    # --- per-head attention; softmax kept in f32 -----------------------------
    for h in range(H):
        lo, hi = h * d, (h + 1) * d
        qh, kh, vh = q[..., lo:hi], k[..., lo:hi], v[..., lo:hi]     # (tb, L, d)
        s = jnp.einsum("bld,bmd->blm", qh, kh,
                       preferred_element_type=jnp.float32)           # (tb, L, L)
        s = s - jnp.max(s, axis=-1, keepdims=True)
        p = jnp.exp(s)
        p = p / jnp.sum(p, axis=-1, keepdims=True)                   # exact divide
        oh = jnp.einsum("blm,bmd->bld", p, vh,
                        preferred_element_type=jnp.float32)          # (tb, L, d)
        o_acc_ref[:, lo:hi] = oh.reshape(rows, d)

    # --- output projection: ONE matmul with K=C (head-sum fused into MXU) ----
    o = o_acc_ref[...].astype(wo_ref.dtype)                          # (rows, C)
    out = jnp.dot(o, wo_ref[...],
                  preferred_element_type=jnp.float32) + bo_ref[...]  # (rows, CP)
    o_ref[...] = out.astype(o_ref.dtype)
    # NOTE: padded columns >= C are exactly zero (weights/bias zero-padded);
    # the wrapper slices them off (skipped entirely when C % 128 == 0).


def prepare_params(params, num_heads=NUM_HEADS, compute_dtype=jnp.bfloat16):
    """Offline weight preprocessing (call once, reuse for every forward call):
    compose to_qkv with the MHA in_proj, fold the 1/sqrt(d) query scale into
    Wq/bq, and lay everything out lane-dense as 2-D right-multiply matrices."""
    C = params["out_proj_w"].shape[0]
    H = num_heads
    assert C % H == 0, "channels must be divisible by num_heads"
    d = C // H

    NQ = _round_up(3 * C, 128)                          # qkv output width, lane-dense
    CP = C if C % 128 == 0 else _round_up(C, 128)       # skip pad when already dense

    w_a = params["to_qkv_w"].astype(jnp.float32)        # (3C, C): qkv_in = x @ w_a.T + b_a
    b_a = params["to_qkv_b"].astype(jnp.float32)
    w_i = params["in_proj_w"].astype(jnp.float32)       # (3C, C): q = q_in @ w_i[:C].T + b_i[:C]
    b_i = params["in_proj_b"].astype(jnp.float32)

    hi = jax.lax.Precision.HIGHEST
    w_cols, b_cols = [], []
    for i in range(3):                                  # q, k, v blocks
        wa = w_a[i * C:(i + 1) * C]
        ba = b_a[i * C:(i + 1) * C]
        wi = w_i[i * C:(i + 1) * C]
        bi = b_i[i * C:(i + 1) * C]
        wf = jnp.dot(wa.T, wi.T, precision=hi)          # (C, C): x @ wf = projected q/k/v
        bf = jnp.dot(ba, wi.T, precision=hi) + bi       # (C,)
        if i == 0:                                      # fold 1/sqrt(d) into the query
            scale = 1.0 / math.sqrt(d)
            wf = wf * scale
            bf = bf * scale
        w_cols.append(wf)
        b_cols.append(bf)
    w_qkv = jnp.pad(jnp.concatenate(w_cols, axis=1), ((0, 0), (0, NQ - 3 * C)))
    b_qkv = jnp.pad(jnp.concatenate(b_cols, axis=0), (0, NQ - 3 * C))[None, :]

    w_out = jnp.pad(params["out_proj_w"].astype(jnp.float32).T, ((0, 0), (0, CP - C)))
    b_out = jnp.pad(params["out_proj_b"].astype(jnp.float32), (0, CP - C))[None, :]

    return {
        "w_qkv": w_qkv.astype(compute_dtype),           # (C, NQ)
        "b_qkv": b_qkv,                                  # (1, NQ) f32 (added to f32 accum)
        "w_out": w_out.astype(compute_dtype),            # (C, CP)
        "b_out": b_out,                                  # (1, CP) f32
    }


def _pick_block_batch(B, L, target_rows):
    """Batch elements folded into one grid step (rows = tb*L).  Target ~256
    rows to fill the MXU M dimension; when the grid has more than one step,
    rows must be a multiple of 8 (sublane tiling)."""
    m = 8 // math.gcd(L, 8)                 # tb must be a multiple of m for rows % 8 == 0
    tb = max(1, target_rows // max(L, 1))
    tb = max(m, (tb // m) * m)
    if tb >= B:
        return B                            # single grid step: full-dim block always legal
    return tb


def _vmem_limit_bytes(rows, C, NQ, CP, in_itemsize, out_itemsize):
    """Explicit scoped-VMEM budget sized to the working set (+ headroom)."""
    weights = C * NQ * in_itemsize + C * CP * in_itemsize + (NQ + CP) * 4
    x_blk = rows * C * in_itemsize
    o_blk = rows * CP * out_itemsize
    scratch = rows * C * 4
    temps = rows * NQ * 4 + 3 * rows * C * 4            # qkv f32 + q/k/v views + slack
    est = 2 * (weights + x_blk + o_blk) + scratch + temps
    return int(min(max(2 * est, 32 * 1024 * 1024), 64 * 1024 * 1024))


def attention_block_blc(x_blc, fused, num_heads=NUM_HEADS, *,
                        target_rows=256, single_buffer_weights=False,
                        interpret=False):
    """Core entry point: x (B, L, C) -> (B, L, C), no layout transposes.

    target_rows: rows (= tb*L) per grid step.  256 fills the v7x 256-wide MXU
      M dimension and is a multiple of the 128-wide v5e/v6e tiles; on v6e/v5e
      (single TensorCore, 128 MiB VMEM) 384-512 is also fine.
    single_buffer_weights: set True on v7x (64 MiB VMEM) for large C so the
      constant weight operands are not double-buffered
      (pipeline_mode=pl.Buffered(1)); off by default for compiler portability.
    """
    B, L, C = x_blc.shape
    H = num_heads
    assert C % H == 0, "channels must be divisible by num_heads"

    w_qkv, b_qkv = fused["w_qkv"], fused["b_qkv"]
    w_out, b_out = fused["w_out"], fused["b_out"]
    NQ, CP = w_qkv.shape[1], w_out.shape[1]
    compute_dtype = w_qkv.dtype
    out_dtype = x_blc.dtype

    # --- block / grid sizing --------------------------------------------------
    tb = _pick_block_batch(B, L, target_rows)
    n_blocks = pl.cdiv(B, tb)
    if n_blocks > 1 and n_blocks % 2:
        n_blocks += 1                       # even grid: balances v7x's 2 TensorCores
    Bp = n_blocks * tb                      # non-divisor B handled by zero padding
    rows = tb * L

    x_flat = x_blc.reshape(B * L, C).astype(compute_dtype)
    if Bp != B:
        x_flat = jnp.pad(x_flat, ((0, (Bp - B) * L), (0, 0)))

    kernel = functools.partial(attention_block_kernel, heads=H, seq_len=L)

    def const_spec(shape):
        if single_buffer_weights:
            return pl.BlockSpec(shape, lambda i: (0, 0),
                                pipeline_mode=pl.Buffered(1))
        return pl.BlockSpec(shape, lambda i: (0, 0))

    vmem_limit = _vmem_limit_bytes(rows, C, NQ, CP,
                                   jnp.dtype(compute_dtype).itemsize,
                                   jnp.dtype(out_dtype).itemsize)

    out_flat = pl.pallas_call(
        kernel,
        out_shape=jax.ShapeDtypeStruct((Bp * L, CP), out_dtype),
        grid_spec=pltpu.PrefetchScalarGridSpec(
            num_scalar_prefetch=0,
            grid=(n_blocks,),
            in_specs=[
                pl.BlockSpec((rows, C), lambda i: (i, 0)),   # activations
                const_spec((C, NQ)),                         # fused qkv weight
                const_spec((1, NQ)),                         # fused qkv bias
                const_spec((C, CP)),                         # out_proj weight
                const_spec((1, CP)),                         # out_proj bias
            ],
            out_specs=pl.BlockSpec((rows, CP), lambda i: (i, 0)),
            scratch_shapes=[pltpu.VMEM((rows, C), jnp.float32)],
        ),
        compiler_params=pltpu.CompilerParams(
            dimension_semantics=("parallel",),
            vmem_limit_bytes=vmem_limit,
        ),
        interpret=interpret,
    )(x_flat, w_qkv, b_qkv, w_out, b_out)

    if CP != C or Bp != B:
        out_flat = out_flat[:B * L, :C]     # fuses into the consumer under jit
    return out_flat.reshape(B, L, C)


def attention_block(x, params_or_fused, num_heads=NUM_HEADS,
                    compute_dtype=jnp.bfloat16):
    """Drop-in PyTorch semantics: x (B, C, L) -> (B, C, L).

    Pass the result of prepare_params() (preferred: fusion done once); a raw
    PyTorch-style param dict is also accepted for convenience.  Prefer
    attention_block_blc with a (B, L, C) model layout to avoid the two
    transposes (each is an extra HBM round trip at larger sizes)."""
    fused = params_or_fused
    if "w_qkv" not in fused:
        fused = prepare_params(fused, num_heads, compute_dtype)
    x_blc = jnp.transpose(x, (0, 2, 1))
    out = attention_block_blc(x_blc, fused, num_heads)
    return jnp.transpose(out, (0, 2, 1))


def reference_jax(x, params):
    """Pure-JAX reference mirroring the PyTorch module (f32)."""
    B, C, L = x.shape
    H = NUM_HEADS
    d = C // H
    xt = jnp.transpose(x, (0, 2, 1))                        # (B, L, C)
    qkv = xt @ params["to_qkv_w"].T + params["to_qkv_b"]
    q_in, k_in, v_in = qkv[..., :C], qkv[..., C:2 * C], qkv[..., 2 * C:]
    win, bin_ = params["in_proj_w"], params["in_proj_b"]
    q = q_in @ win[:C].T + bin_[:C]
    k = k_in @ win[C:2 * C].T + bin_[C:2 * C]
    v = v_in @ win[2 * C:].T + bin_[2 * C:]

    def heads(t):
        return jnp.transpose(t.reshape(B, L, H, d), (0, 2, 1, 3))  # (B, H, L, d)

    qh, kh, vh = heads(q), heads(k), heads(v)
    scores = jnp.einsum("bhqd,bhkd->bhqk", qh, kh) / math.sqrt(d)
    p = jax.nn.softmax(scores, axis=-1)
    o = jnp.einsum("bhqk,bhkd->bhqd", p, vh)
    o = jnp.transpose(o, (0, 2, 1, 3)).reshape(B, L, C)
    o = o @ params["out_proj_w"].T + params["out_proj_b"]
    return jnp.transpose(o, (0, 2, 1))


def make_params(key, C):
    ks = jax.random.split(key, 6)
    s = 1.0 / math.sqrt(C)
    u = lambda k, shape: jax.random.uniform(k, shape, jnp.float32, -s, s)
    return {
        "to_qkv_w": u(ks[0], (3 * C, C)),
        "to_qkv_b": u(ks[1], (3 * C,)),
        "in_proj_w": u(ks[2], (3 * C, C)),
        "in_proj_b": u(ks[3], (3 * C,)),
        "out_proj_w": u(ks[4], (C, C)),
        "out_proj_b": u(ks[5], (C,)),
    }


if __name__ == "__main__":
    key = jax.random.PRNGKey(0)
    k_x, k_p = jax.random.split(key)
    B, C, L = 2, 32, 8                      # C divisible by num_heads=4
    x = jax.random.normal(k_x, (B, C, L), jnp.float32)
    params = make_params(k_p, C)
    ref = reference_jax(x, params)

    # f32 path: tight check of the fused-kernel math against the reference.
    fused_f32 = prepare_params(params, NUM_HEADS, compute_dtype=jnp.float32)
    out_f32 = jax.block_until_ready(attention_block(x, fused_f32))
    assert out_f32.shape == (B, C, L)
    err_f32 = float(jnp.max(jnp.abs(out_f32 - ref)))
    assert jnp.allclose(out_f32, ref, atol=2e-3, rtol=2e-3), \
        f"f32 mismatch vs reference (max abs err {err_f32})"

    # bf16 MXU path: default performance configuration (f32 accumulation,
    # f32 softmax); looser tolerance covers bf16 input rounding.
    fused_bf16 = prepare_params(params, NUM_HEADS, compute_dtype=jnp.bfloat16)
    out_bf16 = jax.block_until_ready(attention_block(x, fused_bf16))
    assert out_bf16.shape == (B, C, L)
    err_bf16 = float(jnp.max(jnp.abs(out_bf16 - ref)))
    assert jnp.allclose(out_bf16, ref, atol=5e-2, rtol=5e-2), \
        f"bf16 mismatch vs reference (max abs err {err_bf16})"

    print("KERNEL_OK")
</pallas_src>

<mosaic_0001>
module attributes {stable_mosaic.version = 11 : i64} {
  func.func @attention_block_kernel(%arg0: i32, %arg1: memref<16x32xf32, #tpu.memory_space<vmem>>, %arg2: memref<32x128xf32, #tpu.memory_space<vmem>>, %arg3: memref<1x128xf32, #tpu.memory_space<vmem>>, %arg4: memref<32x128xf32, #tpu.memory_space<vmem>>, %arg5: memref<1x128xf32, #tpu.memory_space<vmem>>, %arg6: memref<16x128xf32, #tpu.memory_space<vmem>>, %arg7: memref<16x32xf32, #tpu.memory_space<vmem>>) attributes {dimension_semantics = [#tpu.dimension_semantics<parallel>], iteration_bounds = array<i64: 1>, scalar_prefetch = 0 : i64, scratch_operands = 1 : i64, tpu.core_type = #tpu.core_type<tc>, window_params = [{transform_indices = @transform_0, window_bounds = array<i64: 16, 32>}, {pipeline_mode = #tpu.pipeline_mode<synchronous>, transform_indices = @transform_1, window_bounds = array<i64: 32, 128>}, {pipeline_mode = #tpu.pipeline_mode<synchronous>, transform_indices = @transform_2, window_bounds = array<i64: 1, 128>}, {pipeline_mode = #tpu.pipeline_mode<synchronous>, transform_indices = @transform_3, window_bounds = array<i64: 32, 128>}, {pipeline_mode = #tpu.pipeline_mode<synchronous>, transform_indices = @transform_4, window_bounds = array<i64: 1, 128>}, {transform_indices = @transform_5, window_bounds = array<i64: 16, 128>}]} {
    %c0 = arith.constant 0 : index
    %c0_0 = arith.constant 0 : index
    %0 = vector.load %arg1[%c0, %c0_0] : memref<16x32xf32, #tpu.memory_space<vmem>>, vector<16x32xf32>
    %c0_1 = arith.constant 0 : index
    %c0_2 = arith.constant 0 : index
    %1 = vector.load %arg2[%c0_1, %c0_2] : memref<32x128xf32, #tpu.memory_space<vmem>>, vector<32x128xf32>
    %cst = arith.constant dense<0.000000e+00> : vector<16x128xf32>
    %2 = tpu.matmul %0, %1, %cst {dimension_numbers = #tpu.dot_dimension_numbers<[1], [0], [0], [1], [0, 0, 1, 1], [], []>} : vector<16x32xf32>, vector<32x128xf32>, vector<16x128xf32> -> vector<16x128xf32>
    %c0_3 = arith.constant 0 : index
    %c0_4 = arith.constant 0 : index
    %3 = vector.load %arg3[%c0_3, %c0_4] : memref<1x128xf32, #tpu.memory_space<vmem>>, vector<1x128xf32>
    %4 = vector.broadcast %3 : vector<1x128xf32> to vector<16x128xf32>
    %5 = arith.addf %2, %4 : vector<16x128xf32>
    %6 = vector.extract_strided_slice %5 {offsets = [0, 0], sizes = [16, 32], strides = [1, 1]} : vector<16x128xf32> to vector<16x32xf32>
    %7 = vector.shape_cast %6 : vector<16x32xf32> to vector<2x8x32xf32>
    %8 = vector.extract_strided_slice %5 {offsets = [0, 32], sizes = [16, 32], strides = [1, 1]} : vector<16x128xf32> to vector<16x32xf32>
    %9 = vector.shape_cast %8 : vector<16x32xf32> to vector<2x8x32xf32>
    %10 = vector.extract_strided_slice %5 {offsets = [0, 64], sizes = [16, 32], strides = [1, 1]} : vector<16x128xf32> to vector<16x32xf32>
    %11 = vector.shape_cast %10 : vector<16x32xf32> to vector<2x8x32xf32>
    %12 = vector.extract_strided_slice %7 {offsets = [0, 0, 0], sizes = [2, 8, 8], strides = [1, 1, 1]} : vector<2x8x32xf32> to vector<2x8x8xf32>
    %13 = vector.extract_strided_slice %9 {offsets = [0, 0, 0], sizes = [2, 8, 8], strides = [1, 1, 1]} : vector<2x8x32xf32> to vector<2x8x8xf32>
    %14 = vector.extract_strided_slice %11 {offsets = [0, 0, 0], sizes = [2, 8, 8], strides = [1, 1, 1]} : vector<2x8x32xf32> to vector<2x8x8xf32>
    "tpu.trace_start"() <{level = 10 : i32, message = "bld,bmd->blm"}> : () -> ()
    %cst_5 = arith.constant dense<0.000000e+00> : vector<2x8x8xf32>
    %15 = tpu.matmul %12, %13, %cst_5 {dimension_numbers = #tpu.dot_dimension_numbers<[2], [2], [1], [1], [0, 0, 0, 1, 1, 1], [0], [0]>} : vector<2x8x8xf32>, vector<2x8x8xf32>, vector<2x8x8xf32> -> vector<2x8x8xf32>
    "tpu.trace_stop"() : () -> ()
    %cst_6 = arith.constant dense<0xFF800000> : vector<2x8xf32>
    %16 = vector.multi_reduction <maximumf>, %15, %cst_6 [2] : vector<2x8x8xf32> to vector<2x8xf32>
    %17 = vector.shape_cast %16 : vector<2x8xf32> to vector<2x8x1xf32>
    %18 = vector.broadcast %17 : vector<2x8x1xf32> to vector<2x8x8xf32>
    %19 = arith.subf %15, %18 : vector<2x8x8xf32>
    %20 = math.exp %19 : vector<2x8x8xf32>
    %cst_7 = arith.constant dense<0.000000e+00> : vector<2x8xf32>
    %21 = vector.multi_reduction <add>, %20, %cst_7 [2] : vector<2x8x8xf32> to vector<2x8xf32>
    %22 = vector.shape_cast %21 : vector<2x8xf32> to vector<2x8x1xf32>
    %23 = vector.broadcast %22 : vector<2x8x1xf32> to vector<2x8x8xf32>
    %24 = arith.divf %20, %23 : vector<2x8x8xf32>
    "tpu.trace_start"() <{level = 10 : i32, message = "blm,bmd->bld"}> : () -> ()
    %cst_8 = arith.constant dense<0.000000e+00> : vector<2x8x8xf32>
    %25 = tpu.matmul %24, %14, %cst_8 {dimension_numbers = #tpu.dot_dimension_numbers<[2], [1], [1], [2], [0, 0, 0, 1, 1, 2], [0], [0]>} : vector<2x8x8xf32>, vector<2x8x8xf32>, vector<2x8x8xf32> -> vector<2x8x8xf32>
    "tpu.trace_stop"() : () -> ()
    %26 = vector.shape_cast %25 : vector<2x8x8xf32> to vector<16x8xf32>
    %c0_9 = arith.constant 0 : index
    %c0_10 = arith.constant 0 : index
    %27 = vector.load %arg7[%c0_9, %c0_10] : memref<16x32xf32, #tpu.memory_space<vmem>>, vector<16x8xf32>
    tpu.vector_store %arg7[%c0_9, %c0_10], %26 {strides = array<i32>} : memref<16x32xf32, #tpu.memory_space<vmem>>, vector<16x8xf32>,
    %28 = vector.extract_strided_slice %7 {offsets = [0, 0, 8], sizes = [2, 8, 8], strides = [1, 1, 1]} : vector<2x8x32xf32> to vector<2x8x8xf32>
    %29 = vector.extract_strided_slice %9 {offsets = [0, 0, 8], sizes = [2, 8, 8], strides = [1, 1, 1]} : vector<2x8x32xf32> to vector<2x8x8xf32>
    %30 = vector.extract_strided_slice %11 {offsets = [0, 0, 8], sizes = [2, 8, 8], strides = [1, 1, 1]} : vector<2x8x32xf32> to vector<2x8x8xf32>
    "tpu.trace_start"() <{level = 10 : i32, message = "bld,bmd->blm"}> : () -> ()
    %cst_11 = arith.constant dense<0.000000e+00> : vector<2x8x8xf32>
    %31 = tpu.matmul %28, %29, %cst_11 {dimension_numbers = #tpu.dot_dimension_numbers<[2], [2], [1], [1], [0, 0, 0, 1, 1, 1], [0], [0]>} : vector<2x8x8xf32>, vector<2x8x8xf32>, vector<2x8x8xf32> -> vector<2x8x8xf32>
    "tpu.trace_stop"() : () -> ()
    %cst_12 = arith.constant dense<0xFF800000> : vector<2x8xf32>
    %32 = vector.multi_reduction <maximumf>, %31, %cst_12 [2] : vector<2x8x8xf32> to vector<2x8xf32>
    %33 = vector.shape_cast %32 : vector<2x8xf32> to vector<2x8x1xf32>
    %34 = vector.broadcast %33 : vector<2x8x1xf32> to vector<2x8x8xf32>
    %35 = arith.subf %31, %34 : vector<2x8x8xf32>
    %36 = math.exp %35 : vector<2x8x8xf32>
    %cst_13 = arith.constant dense<0.000000e+00> : vector<2x8xf32>
    %37 = vector.multi_reduction <add>, %36, %cst_13 [2] : vector<2x8x8xf32> to vector<2x8xf32>
    %38 = vector.shape_cast %37 : vector<2x8xf32> to vector<2x8x1xf32>
    %39 = vector.broadcast %38 : vector<2x8x1xf32> to vector<2x8x8xf32>
    %40 = arith.divf %36, %39 : vector<2x8x8xf32>
    "tpu.trace_start"() <{level = 10 : i32, message = "blm,bmd->bld"}> : () -> ()
    %cst_14 = arith.constant dense<0.000000e+00> : vector<2x8x8xf32>
    %41 = tpu.matmul %40, %30, %cst_14 {dimension_numbers = #tpu.dot_dimension_numbers<[2], [1], [1], [2], [0, 0, 0, 1, 1, 2], [0], [0]>} : vector<2x8x8xf32>, vector<2x8x8xf32>, vector<2x8x8xf32> -> vector<2x8x8xf32>
    "tpu.trace_stop"() : () -> ()
    %42 = vector.shape_cast %41 : vector<2x8x8xf32> to vector<16x8xf32>
    %c0_15 = arith.constant 0 : index
    %c8 = arith.constant 8 : index
    %43 = vector.load %arg7[%c0_15, %c8] : memref<16x32xf32, #tpu.memory_space<vmem>>, vector<16x8xf32>
    tpu.vector_store %arg7[%c0_15, %c8], %42 {strides = array<i32>} : memref<16x32xf32, #tpu.memory_space<vmem>>, vector<16x8xf32>,
    %44 = vector.extract_strided_slice %7 {offsets = [0, 0, 16], sizes = [2, 8, 8], strides = [1, 1, 1]} : vector<2x8x32xf32> to vector<2x8x8xf32>
    %45 = vector.extract_strided_slice %9 {offsets = [0, 0, 16], sizes = [2, 8, 8], strides = [1, 1, 1]} : vector<2x8x32xf32> to vector<2x8x8xf32>
    %46 = vector.extract_strided_slice %11 {offsets = [0, 0, 16], sizes = [2, 8, 8], strides = [1, 1, 1]} : vector<2x8x32xf32> to vector<2x8x8xf32>
    "tpu.trace_start"() <{level = 10 : i32, message = "bld,bmd->blm"}> : () -> ()
    %cst_16 = arith.constant dense<0.000000e+00> : vector<2x8x8xf32>
    %47 = tpu.matmul %44, %45, %cst_16 {dimension_numbers = #tpu.dot_dimension_numbers<[2], [2], [1], [1], [0, 0, 0, 1, 1, 1], [0], [0]>} : vector<2x8x8xf32>, vector<2x8x8xf32>, vector<2x8x8xf32> -> vector<2x8x8xf32>
    "tpu.trace_stop"() : () -> ()
    %cst_17 = arith.constant dense<0xFF800000> : vector<2x8xf32>
    %48 = vector.multi_reduction <maximumf>, %47, %cst_17 [2] : vector<2x8x8xf32> to vector<2x8xf32>
    %49 = vector.shape_cast %48 : vector<2x8xf32> to vector<2x8x1xf32>
    %50 = vector.broadcast %49 : vector<2x8x1xf32> to vector<2x8x8xf32>
    %51 = arith.subf %47, %50 : vector<2x8x8xf32>
    %52 = math.exp %51 : vector<2x8x8xf32>
    %cst_18 = arith.constant dense<0.000000e+00> : vector<2x8xf32>
    %53 = vector.multi_reduction <add>, %52, %cst_18 [2] : vector<2x8x8xf32> to vector<2x8xf32>
    %54 = vector.shape_cast %53 : vector<2x8xf32> to vector<2x8x1xf32>
    %55 = vector.broadcast %54 : vector<2x8x1xf32> to vector<2x8x8xf32>
    %56 = arith.divf %52, %55 : vector<2x8x8xf32>
    "tpu.trace_start"() <{level = 10 : i32, message = "blm,bmd->bld"}> : () -> ()
    %cst_19 = arith.constant dense<0.000000e+00> : vector<2x8x8xf32>
    %57 = tpu.matmul %56, %46, %cst_19 {dimension_numbers = #tpu.dot_dimension_numbers<[2], [1], [1], [2], [0, 0, 0, 1, 1, 2], [0], [0]>} : vector<2x8x8xf32>, vector<2x8x8xf32>, vector<2x8x8xf32> -> vector<2x8x8xf32>
    "tpu.trace_stop"() : () -> ()
    %58 = vector.shape_cast %57 : vector<2x8x8xf32> to vector<16x8xf32>
    %c0_20 = arith.constant 0 : index
    %c16 = arith.constant 16 : index
    %59 = vector.load %arg7[%c0_20, %c16] : memref<16x32xf32, #tpu.memory_space<vmem>>, vector<16x8xf32>
    tpu.vector_store %arg7[%c0_20, %c16], %58 {strides = array<i32>} : memref<16x32xf32, #tpu.memory_space<vmem>>, vector<16x8xf32>,
    %60 = vector.extract_strided_slice %7 {offsets = [0, 0, 24], sizes = [2, 8, 8], strides = [1, 1, 1]} : vector<2x8x32xf32> to vector<2x8x8xf32>
    %61 = vector.extract_strided_slice %9 {offsets = [0, 0, 24], sizes = [2, 8, 8], strides = [1, 1, 1]} : vector<2x8x32xf32> to vector<2x8x8xf32>
    %62 = vector.extract_strided_slice %11 {offsets = [0, 0, 24], sizes = [2, 8, 8], strides = [1, 1, 1]} : vector<2x8x32xf32> to vector<2x8x8xf32>
    "tpu.trace_start"() <{level = 10 : i32, message = "bld,bmd->blm"}> : () -> ()
    %cst_21 = arith.constant dense<0.000000e+00> : vector<2x8x8xf32>
    %63 = tpu.matmul %60, %61, %cst_21 {dimension_numbers = #tpu.dot_dimension_numbers<[2], [2], [1], [1], [0, 0, 0, 1, 1, 1], [0], [0]>} : vector<2x8x8xf32>, vector<2x8x8xf32>, vector<2x8x8xf32> -> vector<2x8x8xf32>
    "tpu.trace_stop"() : () -> ()
    %cst_22 = arith.constant dense<0xFF800000> : vector<2x8xf32>
    %64 = vector.multi_reduction <maximumf>, %63, %cst_22 [2] : vector<2x8x8xf32> to vector<2x8xf32>
    %65 = vector.shape_cast %64 : vector<2x8xf32> to vector<2x8x1xf32>
    %66 = vector.broadcast %65 : vector<2x8x1xf32> to vector<2x8x8xf32>
    %67 = arith.subf %63, %66 : vector<2x8x8xf32>
    %68 = math.exp %67 : vector<2x8x8xf32>
    %cst_23 = arith.constant dense<0.000000e+00> : vector<2x8xf32>
    %69 = vector.multi_reduction <add>, %68, %cst_23 [2] : vector<2x8x8xf32> to vector<2x8xf32>
    %70 = vector.shape_cast %69 : vector<2x8xf32> to vector<2x8x1xf32>
    %71 = vector.broadcast %70 : vector<2x8x1xf32> to vector<2x8x8xf32>
    %72 = arith.divf %68, %71 : vector<2x8x8xf32>
    "tpu.trace_start"() <{level = 10 : i32, message = "blm,bmd->bld"}> : () -> ()
    %cst_24 = arith.constant dense<0.000000e+00> : vector<2x8x8xf32>
    %73 = tpu.matmul %72, %62, %cst_24 {dimension_numbers = #tpu.dot_dimension_numbers<[2], [1], [1], [2], [0, 0, 0, 1, 1, 2], [0], [0]>} : vector<2x8x8xf32>, vector<2x8x8xf32>, vector<2x8x8xf32> -> vector<2x8x8xf32>
    "tpu.trace_stop"() : () -> ()
    %74 = vector.shape_cast %73 : vector<2x8x8xf32> to vector<16x8xf32>
    %c0_25 = arith.constant 0 : index
    %c24 = arith.constant 24 : index
    %75 = vector.load %arg7[%c0_25, %c24] : memref<16x32xf32, #tpu.memory_space<vmem>>, vector<16x8xf32>
    tpu.vector_store %arg7[%c0_25, %c24], %74 {strides = array<i32>} : memref<16x32xf32, #tpu.memory_space<vmem>>, vector<16x8xf32>,
    %c0_26 = arith.constant 0 : index
    %c0_27 = arith.constant 0 : index
    %76 = vector.load %arg7[%c0_26, %c0_27] : memref<16x32xf32, #tpu.memory_space<vmem>>, vector<16x32xf32>
    %c0_28 = arith.constant 0 : index
    %c0_29 = arith.constant 0 : index
    %77 = vector.load %arg4[%c0_28, %c0_29] : memref<32x128xf32, #tpu.memory_space<vmem>>, vector<32x128xf32>
    %cst_30 = arith.constant dense<0.000000e+00> : vector<16x128xf32>
    %78 = tpu.matmul %76, %77, %cst_30 {dimension_numbers = #tpu.dot_dimension_numbers<[1], [0], [0], [1], [0, 0, 1, 1], [], []>} : vector<16x32xf32>, vector<32x128xf32>, vector<16x128xf32> -> vector<16x128xf32>
    %c0_31 = arith.constant 0 : index
    %c0_32 = arith.constant 0 : index
    %79 = vector.load %arg5[%c0_31, %c0_32] : memref<1x128xf32, #tpu.memory_space<vmem>>, vector<1x128xf32>
    %80 = vector.broadcast %79 : vector<1x128xf32> to vector<16x128xf32>
    %81 = arith.addf %78, %80 : vector<16x128xf32>
    %c0_33 = arith.constant 0 : index
    %c0_34 = arith.constant 0 : index
    %82 = vector.load %arg6[%c0_33, %c0_34] : memref<16x128xf32, #tpu.memory_space<vmem>>, vector<16x128xf32>
    tpu.vector_store %arg6[%c0_33, %c0_34], %81 {strides = array<i32>} : memref<16x128xf32, #tpu.memory_space<vmem>>, vector<16x128xf32>,
    return
  }
  func.func @transform_0(%arg0: i32) -> (i32, i32) {
    %c0_i32 = arith.constant 0 : i32
    %c0_i32_0 = arith.constant 0 : i32
    return %arg0, %c0_i32 : i32, i32
  }
  func.func @transform_1(%arg0: i32) -> (i32, i32) {
    %c0_i32 = arith.constant 0 : i32
    %c0_i32_0 = arith.constant 0 : i32
    %c0_i32_1 = arith.constant 0 : i32
    return %c0_i32, %c0_i32_0 : i32, i32
  }
  func.func @transform_2(%arg0: i32) -> (i32, i32) {
    %c0_i32 = arith.constant 0 : i32
    %c0_i32_0 = arith.constant 0 : i32
    %c0_i32_1 = arith.constant 0 : i32
    return %c0_i32, %c0_i32_0 : i32, i32
  }
  func.func @transform_3(%arg0: i32) -> (i32, i32) {
    %c0_i32 = arith.constant 0 : i32
    %c0_i32_0 = arith.constant 0 : i32
    %c0_i32_1 = arith.constant 0 : i32
    return %c0_i32, %c0_i32_0 : i32, i32
  }
  func.func @transform_4(%arg0: i32) -> (i32, i32) {
    %c0_i32 = arith.constant 0 : i32
    %c0_i32_0 = arith.constant 0 : i32
    %c0_i32_1 = arith.constant 0 : i32
    return %c0_i32, %c0_i32_0 : i32, i32
  }
  func.func @transform_5(%arg0: i32) -> (i32, i32) {
    %c0_i32 = arith.constant 0 : i32
    %c0_i32_0 = arith.constant 0 : i32
    return %arg0, %c0_i32 : i32, i32
  }
}

</mosaic_0001>

<llo_original>
// kernel: tpu_custom_call.1
$region0: #{tpu_custom_call.1}
  #allocation0 [shape = 'u32[]', space=smem, size = 0x4, offset = 0x4, fixed_abs, tag = 'smem constant byte address 0x4 - core index']
  #allocation1 [shape = 'u32[72,128]{1,0:T(1,128)}', space=vmem, size = 0x9000, scoped, tag = 'internal scratch']
  #allocation2 [shape = 'f32[16,32]{1,0:T(8,128)}', space=vmem, size = 0x2000, scoped, tag = 'scratch operand']
  %s0 = inlined_call_operand.hbm [shape: f32[16,32], index: 0, kind: input, shape index: {}]
  %s1 = inlined_call_operand.hbm [shape: f32[32,128], index: 1, kind: input, shape index: {}]
  %s2 = inlined_call_operand.vmem [shape: f32[1,128], index: 2, kind: input, shape index: {}]
  %s3 = inlined_call_operand.hbm [shape: f32[32,128], index: 3, kind: input, shape index: {}]
  %s4 = inlined_call_operand.vmem [shape: f32[1,128], index: 4, kind: input, shape index: {}]
  %s5 = inlined_call_operand.hbm [shape: f32[16,128], index: 5, kind: output, shape index: {}]
  %s6 = sld [smem:[#allocation0]]
  $region42: #{tpu_custom_call.1} parent=0
    _
  %s8 = ssub.s32 1, %s6
  %s9 = scalar_select 0, %s8, %s6
  $region1: #{tpu_custom_call.1} parent=0
    #allocation3 [shape = 'u8[8192]{0}', space=vmem, size = 0x2000, scoped, tag = 'input window, operand 0, single buffered']
    #allocation4 [shape = 's32[1]{0}', space=sflag, size = 0x4, scoped, tag = 'scoped memory for tpu_custom_call.1']
    #allocation5 [shape = 's32[1]{0}', space=sflag, size = 0x4, scoped, tag = 'scoped memory for tpu_custom_call.1']
    #allocation6 [shape = 'u8[16384]{0}', space=vmem, size = 0x4000, scoped, tag = 'input window, operand 1, single buffered']
    #allocation7 [shape = 's32[1]{0}', space=sflag, size = 0x4, scoped, tag = 'scoped memory for tpu_custom_call.1']
    #allocation8 [shape = 'u8[16384]{0}', space=vmem, size = 0x4000, scoped, tag = 'input window, operand 3, single buffered']
    #allocation9 [shape = 'u8[8192]{0}', space=vmem, size = 0x2000, scoped, tag = 'output window, operand 0, single buffered']
    %10 = vsyncpa [#allocation4], 0
    %11 = vsyncpa [#allocation7], 0
    %12 = vsyncpa [#allocation5], 0
    // Predicated region
    $region2: #{tpu_custom_call.1} parent=1 // pred_check
      _
    $region3: #{tpu_custom_call.1} parent=1 // pred_check_branch
      %14 = sbr.rel (0) target = $region5
    $region4: #{tpu_custom_call.1} parent=1 // pred_region
      %16 = vsyncadd [#allocation4], 0
      %s17 = sshll.u32 %s0, 4
      %s18 = int_to_ptr.hbm [resolvable:$true] %s17
      %s19 = sshll.u32 [#allocation3], 4
      %s20 = int_to_ptr.vmem [resolvable:$true] %s19
      %25 = dma.hbm_to_vmem [thread:$0]  %s18, 256, %s20, [#allocation4], 128, 128, 8
    $region5: #{tpu_custom_call.1} parent=1 // pred_fallthru
      _
    // Predicated region
    $region6: #{tpu_custom_call.1} parent=1 // pred_check
      _
    $region7: #{tpu_custom_call.1} parent=1 // pred_check_branch
      %27 = sbr.rel (0) target = $region9
    $region8: #{tpu_custom_call.1} parent=1 // pred_region
      %29 = vsyncadd [#allocation7], 0
      %s30 = sshll.u32 %s1, 4
      %s31 = int_to_ptr.hbm [resolvable:$true] %s30
      %s32 = sshll.u32 [#allocation6], 4
      %s33 = int_to_ptr.vmem [resolvable:$true] %s32
      %38 = dma.hbm_to_vmem [thread:$0]  %s31, 512, %s33, [#allocation7], 128, 128, 8
    $region9: #{tpu_custom_call.1} parent=1 // pred_fallthru
      _
    // Predicated region
    $region10: #{tpu_custom_call.1} parent=1 // pred_check
      _
    $region11: #{tpu_custom_call.1} parent=1 // pred_check_branch
      %40 = sbr.rel (0) target = $region13
    $region12: #{tpu_custom_call.1} parent=1 // pred_region
      _
    $region13: #{tpu_custom_call.1} parent=1 // pred_fallthru
      _
    // Predicated region
    $region14: #{tpu_custom_call.1} parent=1 // pred_check
      _
    $region15: #{tpu_custom_call.1} parent=1 // pred_check_branch
      %42 = sbr.rel (0) target = $region17
    $region16: #{tpu_custom_call.1} parent=1 // pred_region
      %44 = vsyncadd [#allocation7], 0
      %s45 = sshll.u32 %s3, 4
      %s46 = int_to_ptr.hbm [resolvable:$true] %s45
      %s47 = sshll.u32 [#allocation8], 4
      %s48 = int_to_ptr.vmem [resolvable:$true] %s47
      %53 = dma.hbm_to_vmem [thread:$0]  %s46, 512, %s48, [#allocation7], 128, 128, 8
    $region17: #{tpu_custom_call.1} parent=1 // pred_fallthru
      _
    // Predicated region
    $region18: #{tpu_custom_call.1} parent=1 // pred_check
      _
    $region19: #{tpu_custom_call.1} parent=1 // pred_check_branch
      %55 = sbr.rel (0) target = $region21
    $region20: #{tpu_custom_call.1} parent=1 // pred_region
      _
    $region21: #{tpu_custom_call.1} parent=1 // pred_fallthru
      _
    // Predicated region
    $region22: #{tpu_custom_call.1} parent=1 // pred_check
      _
    $region23: #{tpu_custom_call.1} parent=1 // pred_check_branch
      %57 = sbr.rel (0) target = $region25
    $region24: #{tpu_custom_call.1} parent=1 // pred_region
      %59 = dma.done [#allocation4], 256
    $region25: #{tpu_custom_call.1} parent=1 // pred_fallthru
      _
    // Predicated region
    $region26: #{tpu_custom_call.1} parent=1 // pred_check
      _
    $region27: #{tpu_custom_call.1} parent=1 // pred_check_branch
      %61 = sbr.rel (0) target = $region29
    $region28: #{tpu_custom_call.1} parent=1 // pred_region
      %63 = dma.done [#allocation7], 512
    $region29: #{tpu_custom_call.1} parent=1 // pred_fallthru
      _
    // Predicated region
    $region30: #{tpu_custom_call.1} parent=1 // pred_check
      _
    $region31: #{tpu_custom_call.1} parent=1 // pred_check_branch
      %65 = sbr.rel (0) target = $region33
    $region32: #{tpu_custom_call.1} parent=1 // pred_region
      %67 = dma.done [#allocation7], 512
    $region33: #{tpu_custom_call.1} parent=1 // pred_fallthru
      _
    %v68 = vld [vmem:[#allocation3] sm:$0xff]
    %v69 = vld [vmem:[#allocation3 + $0x8] sm:$0xff]
    %v70 = vld [vmem:[#allocation6] sm:$0xff]
    %v71 = vld [vmem:[#allocation6 + $0x8] sm:$0xff]
    %v72 = vld [vmem:[#allocation6 + $0x10] sm:$0xff]
    %v73 = vld [vmem:[#allocation6 + $0x18] sm:$0xff]
    %v74 = vld [vmem:[%s2] sm:$0x1]
    %v76 = vperm.slane %v74, 0
    %vm78 = vcmask 261120
    %v80 = vsel %vm78, %v68, 0
    %v83 = vsel %vm78, %v69, 0
    %85 = vmatpush.msra.mxu0 0.0
    %86 = vmatpush.msra.mxu0 0.0
    %87 = vmatpush.msra.mxu0 0.0
    %88 = vmatpush.msra.mxu0 0.0
    %89 = vmatpush.msra.mxu0 0.0
    %90 = vmatpush.msra.mxu0 0.0
    %91 = vmatpush.msra.mxu0 0.0
    %92 = vmatpush.msra.mxu0 0.0
    %93 = vmatpush.msra.mxu0 0.0
    %94 = vmatpush.msra.mxu0 0.0
    %95 = vmatpush.msra.mxu0 0.0
    %96 = vmatpush.msra.mxu0 0.0
    %97 = vmatpush.msra.mxu0 %v73
    %98 = vmatpush.msra.mxu0 %v72
    %99 = vmatpush.msra.mxu0 %v71
    %100 = vmatpush.msra.mxu0 %v70
    %101 = vmatmul.f32.gmra.mxu0 %v80
    %v102 = vpop.f32.mrf.mxu0
    %v103 = vadd.f32 %v76, %v102
    %104 = vmatmul.f32.gmra.mxu0 %v83
    %v105 = vpop.f32.mrf.mxu0
    %v106 = vadd.f32 %v76, %v105
    %107 = vdwg.mxu0
    %109 = vrot.lane.b32.xlu0 %v103, 96
    %v110 = vpop.permute.xlu0 %109
    %vm111 = vcmask 64512
    %v112 = vsel %vm111, %v103, 0
    %v114 = vsel %vm111, %v110, 0
    %116 = vmatpush.xpose.msra.mxu0 0.0
    %117 = vmatpush.xpose.msra.mxu0 0.0
    %118 = vmatpush.xpose.msra.mxu0 0.0
    %119 = vmatpush.xpose.msra.mxu0 0.0
    %120 = vmatpush.xpose.msra.mxu0 0.0
    %121 = vmatpush.xpose.msra.mxu0 0.0
    %122 = vmatpush.xpose.msra.mxu0 0.0
    %123 = vmatpush.xpose.msra.mxu0 0.0
    %124 = vmatpush.xpose.msra.mxu0 0.0
    %125 = vmatpush.xpose.msra.mxu0 0.0
    %126 = vmatpush.xpose.msra.mxu0 0.0
    %127 = vmatpush.xpose.msra.mxu0 0.0
    %128 = vmatpush.xpose.msra.mxu0 0.0
    %129 = vmatpush.xpose.msra.mxu0 0.0
    %130 = vmatpush.xpose.msra.mxu0 0.0
    %131 = vmatpush.xpose.msra.mxu0 %v114
    %132 = vmatmul.f32.gmra.mxu0 %v112
    %v133 = vpop.f32.mrf.mxu0
    %v134 = vadd.f32 0.0, %v133
    %135 = vdwg.mxu0
    %137 = vrot.lane.b32.xlu0 %v106, 96
    %v138 = vpop.permute.xlu0 %137
    %v139 = vsel %vm111, %v106, 0
    %v141 = vsel %vm111, %v138, 0
    %143 = vmatpush.xpose.msra.mxu0 0.0
    %144 = vmatpush.xpose.msra.mxu0 0.0
    %145 = vmatpush.xpose.msra.mxu0 0.0
    %146 = vmatpush.xpose.msra.mxu0 0.0
    %147 = vmatpush.xpose.msra.mxu0 0.0
    %148 = vmatpush.xpose.msra.mxu0 0.0
    %149 = vmatpush.xpose.msra.mxu0 0.0
    %150 = vmatpush.xpose.msra.mxu0 0.0
    %151 = vmatpush.xpose.msra.mxu0 0.0
    %152 = vmatpush.xpose.msra.mxu0 0.0
    %153 = vmatpush.xpose.msra.mxu0 0.0
    %154 = vmatpush.xpose.msra.mxu0 0.0
    %155 = vmatpush.xpose.msra.mxu0 0.0
    %156 = vmatpush.xpose.msra.mxu0 0.0
    %157 = vmatpush.xpose.msra.mxu0 0.0
    %158 = vmatpush.xpose.msra.mxu0 %v141
    %159 = vmatmul.f32.gmra.mxu0 %v139
    %v160 = vpop.f32.mrf.mxu0
    %v161 = vadd.f32 0.0, %v160
    %162 = vdwg.mxu0
    %v163 = vsel %vm111, %v134, -inf
    %164 = vmax.xlane.f32.xlu0 %v163
    %v165 = vpop.xlane.xlu0 %164
    %v166 = vsel %vm111, %v161, -inf
    %167 = vmax.xlane.f32.xlu0 %v166
    %v168 = vpop.xlane.xlu0 %167
    %v169 = vsub.f32 %v134, %v165
    %v170 = vsub.f32 %v161, %v168
    %v171 = vmul.f32 %v169, 1.442695
    %v172 = vpow.pop %v171
    %v173 = vmul.f32 %v170, 1.442695
    %v174 = vpow.pop %v173
    %v175 = vsel %vm111, %v172, 0.0
    %176 = vadd.xlane.f32.xlu0 %v175
    %v177 = vpop.xlane.xlu0 %176
    %v178 = vsel %vm111, %v174, 0.0
    %179 = vadd.xlane.f32.xlu0 %v178
    %v180 = vpop.xlane.xlu0 %179
    %v181 = vrcp.pop %v177
    %v182 = vmul.f32 %v177, %v181
    %v183 = vsub.f32 1.0, %v182
    %v184 = vmul.f32 %v181, %v183
    %v185 = vadd.f32 %v181, %v184
    %vm186 = vweird.f32 %v177
    %vm187 = vweird.f32 %v181
    %vm188 = vmor %vm186, %vm187
    %v189 = vsel %vm188, %v181, %v185
    %v190 = vand.u32 2147483647, %v177
    %vm191 = vcmp.eq.f32.partialorder %v190, 8.507059e+37
    %v192 = vand.u32 %v177, 2147483648
    %v193 = vor.u32 1.1754944e-38, %v192
    %v194 = vsel %vm191, %v193, %v189
    %v195 = vmul.f32 %v172, %v194
    %v196 = vrcp.pop %v180
    %v197 = vmul.f32 %v180, %v196
    %v198 = vsub.f32 1.0, %v197
    %v199 = vmul.f32 %v196, %v198
    %v200 = vadd.f32 %v196, %v199
    %vm201 = vweird.f32 %v180
    %vm202 = vweird.f32 %v196
    %vm203 = vmor %vm201, %vm202
    %v204 = vsel %vm203, %v196, %v200
    %v205 = vand.u32 2147483647, %v180
    %vm206 = vcmp.eq.f32.partialorder %v205, 8.507059e+37
    %v207 = vand.u32 %v180, 2147483648
    %v208 = vor.u32 1.1754944e-38, %v207
    %v209 = vsel %vm206, %v208, %v204
    %v210 = vmul.f32 %v174, %v209
    %211 = vrot.lane.b32.xlu0 %v103, 64
    %v212 = vpop.permute.xlu0 %211
    %v215 = vsel %vm111, %v195, 0
    %217 = vmatpush.msra.mxu0 0.0
    %218 = vmatpush.msra.mxu0 0.0
    %219 = vmatpush.msra.mxu0 0.0
    %220 = vmatpush.msra.mxu0 0.0
    %221 = vmatpush.msra.mxu0 0.0
    %222 = vmatpush.msra.mxu0 0.0
    %223 = vmatpush.msra.mxu0 0.0
    %224 = vmatpush.msra.mxu0 0.0
    %225 = vmatpush.msra.mxu0 0.0
    %226 = vmatpush.msra.mxu0 0.0
    %227 = vmatpush.msra.mxu0 0.0
    %228 = vmatpush.msra.mxu0 0.0
    %229 = vmatpush.msra.mxu0 0.0
    %230 = vmatpush.msra.mxu0 0.0
    %231 = vmatpush.msra.mxu0 0.0
    %232 = vmatpush.msra.mxu0 %v212
    %233 = vmatmul.f32.gmra.mxu0 %v215
    %v234 = vpop.f32.mrf.mxu0
    %v235 = vadd.f32 0.0, %v234
    %236 = vdwg.mxu0
    %237 = vrot.lane.b32.xlu0 %v106, 64
    %v238 = vpop.permute.xlu0 %237
    %v241 = vsel %vm111, %v210, 0
    %243 = vmatpush.msra.mxu0 0.0
    %244 = vmatpush.msra.mxu0 0.0
    %245 = vmatpush.msra.mxu0 0.0
    %246 = vmatpush.msra.mxu0 0.0
    %247 = vmatpush.msra.mxu0 0.0
    %248 = vmatpush.msra.mxu0 0.0
    %249 = vmatpush.msra.mxu0 0.0
    %250 = vmatpush.msra.mxu0 0.0
    %251 = vmatpush.msra.mxu0 0.0
    %252 = vmatpush.msra.mxu0 0.0
    %253 = vmatpush.msra.mxu0 0.0
    %254 = vmatpush.msra.mxu0 0.0
    %255 = vmatpush.msra.mxu0 0.0
    %256 = vmatpush.msra.mxu0 0.0
    %257 = vmatpush.msra.mxu0 0.0
    %258 = vmatpush.msra.mxu0 %v238
    %259 = vmatmul.f32.gmra.mxu0 %v241
    %v260 = vpop.f32.mrf.mxu0
    %v261 = vadd.f32 0.0, %v260
    %262 = vdwg.mxu0
    %263 = vst.msk [vmem:[#allocation2] sm:$0xff] %vm111, %v235
    %264 = vst.msk [vmem:[#allocation2 + $0x8] sm:$0xff] %vm111, %v261
    %265 = vrot.lane.b32.xlu0 %v103, 120
    %v266 = vpop.permute.xlu0 %265
    %267 = vrot.lane.b32.xlu0 %v103, 88
    %v268 = vpop.permute.xlu0 %267
    %v269 = vsel %vm111, %v266, 0
    %v271 = vsel %vm111, %v268, 0
    %273 = vmatpush.xpose.msra.mxu0 0.0
    %274 = vmatpush.xpose.msra.mxu0 0.0
    %275 = vmatpush.xpose.msra.mxu0 0.0
    %276 = vmatpush.xpose.msra.mxu0 0.0
    %277 = vmatpush.xpose.msra.mxu0 0.0
    %278 = vmatpush.xpose.msra.mxu0 0.0
    %279 = vmatpush.xpose.msra.mxu0 0.0
    %280 = vmatpush.xpose.msra.mxu0 0.0
    %281 = vmatpush.xpose.msra.mxu0 0.0
    %282 = vmatpush.xpose.msra.mxu0 0.0
    %283 = vmatpush.xpose.msra.mxu0 0.0
    %284 = vmatpush.xpose.msra.mxu0 0.0
    %285 = vmatpush.xpose.msra.mxu0 0.0
    %286 = vmatpush.xpose.msra.mxu0 0.0
    %287 = vmatpush.xpose.msra.mxu0 0.0
    %288 = vmatpush.xpose.msra.mxu0 %v271
    %289 = vmatmul.f32.gmra.mxu0 %v269
    %v290 = vpop.f32.mrf.mxu0
    %v291 = vadd.f32 0.0, %v290
    %292 = vdwg.mxu0
    %293 = vrot.lane.b32.xlu0 %v106, 120
    %v294 = vpop.permute.xlu0 %293
    %295 = vrot.lane.b32.xlu0 %v106, 88
    %v296 = vpop.permute.xlu0 %295
    %v297 = vsel %vm111, %v294, 0
    %v299 = vsel %vm111, %v296, 0
    %301 = vmatpush.xpose.msra.mxu0 0.0
    %302 = vmatpush.xpose.msra.mxu0 0.0
    %303 = vmatpush.xpose.msra.mxu0 0.0
    %304 = vmatpush.xpose.msra.mxu0 0.0
    %305 = vmatpush.xpose.msra.mxu0 0.0
    %306 = vmatpush.xpose.msra.mxu0 0.0
    %307 = vmatpush.xpose.msra.mxu0 0.0
    %308 = vmatpush.xpose.msra.mxu0 0.0
    %309 = vmatpush.xpose.msra.mxu0 0.0
    %310 = vmatpush.xpose.msra.mxu0 0.0
    %311 = vmatpush.xpose.msra.mxu0 0.0
    %312 = vmatpush.xpose.msra.mxu0 0.0
    %313 = vmatpush.xpose.msra.mxu0 0.0
    %314 = vmatpush.xpose.msra.mxu0 0.0
    %315 = vmatpush.xpose.msra.mxu0 0.0
    %316 = vmatpush.xpose.msra.mxu0 %v299
    %317 = vmatmul.f32.gmra.mxu0 %v297
    %v318 = vpop.f32.mrf.mxu0
    %v319 = vadd.f32 0.0, %v318
    %320 = vdwg.mxu0
    %v321 = vsel %vm111, %v291, -inf
    %322 = vmax.xlane.f32.xlu0 %v321
    %v323 = vpop.xlane.xlu0 %322
    %v324 = vsel %vm111, %v319, -inf
    %325 = vmax.xlane.f32.xlu0 %v324
    %v326 = vpop.xlane.xlu0 %325
    %v327 = vsub.f32 %v291, %v323
    %v328 = vsub.f32 %v319, %v326
    %v329 = vmul.f32 %v327, 1.442695
    %v330 = vpow.pop %v329
    %v331 = vmul.f32 %v328, 1.442695
    %v332 = vpow.pop %v331
    %v333 = vsel %vm111, %v330, 0.0
    %334 = vadd.xlane.f32.xlu0 %v333
    %v335 = vpop.xlane.xlu0 %334
    %v336 = vsel %vm111, %v332, 0.0
    %337 = vadd.xlane.f32.xlu0 %v336
    %v338 = vpop.xlane.xlu0 %337
    %v339 = vrcp.pop %v335
    %v340 = vmul.f32 %v335, %v339
    %v341 = vsub.f32 1.0, %v340
    %v342 = vmul.f32 %v339, %v341
    %v343 = vadd.f32 %v339, %v342
    %vm344 = vweird.f32 %v335
    %vm345 = vweird.f32 %v339
    %vm346 = vmor %vm344, %vm345
    %v347 = vsel %vm346, %v339, %v343
    %v348 = vand.u32 2147483647, %v335
    %vm349 = vcmp.eq.f32.partialorder %v348, 8.507059e+37
    %v350 = vand.u32 %v335, 2147483648
    %v351 = vor.u32 1.1754944e-38, %v350
    %v352 = vsel %vm349, %v351, %v347
    %v353 = vmul.f32 %v330, %v352
    %v354 = vrcp.pop %v338
    %v355 = vmul.f32 %v338, %v354
    %v356 = vsub.f32 1.0, %v355
    %v357 = vmul.f32 %v354, %v356
    %v358 = vadd.f32 %v354, %v357
    %vm359 = vweird.f32 %v338
    %vm360 = vweird.f32 %v354
    %vm361 = vmor %vm359, %vm360
    %v362 = vsel %vm361, %v354, %v358
    %v363 = vand.u32 2147483647, %v338
    %vm364 = vcmp.eq.f32.partialorder %v363, 8.507059e+37
    %v365 = vand.u32 %v338, 2147483648
    %v366 = vor.u32 1.1754944e-38, %v365
    %v367 = vsel %vm364, %v366, %v362
    %v368 = vmul.f32 %v332, %v367
    %369 = vrot.lane.b32.xlu0 %v103, 56
    %v370 = vpop.permute.xlu0 %369
    %v373 = vsel %vm111, %v353, 0
    %375 = vmatpush.msra.mxu0 0.0
    %376 = vmatpush.msra.mxu0 0.0
    %377 = vmatpush.msra.mxu0 0.0
    %378 = vmatpush.msra.mxu0 0.0
    %379 = vmatpush.msra.mxu0 0.0
    %380 = vmatpush.msra.mxu0 0.0
    %381 = vmatpush.msra.mxu0 0.0
    %382 = vmatpush.msra.mxu0 0.0
    %383 = vmatpush.msra.mxu0 0.0
    %384 = vmatpush.msra.mxu0 0.0
    %385 = vmatpush.msra.mxu0 0.0
    %386 = vmatpush.msra.mxu0 0.0
    %387 = vmatpush.msra.mxu0 0.0
    %388 = vmatpush.msra.mxu0 0.0
    %389 = vmatpush.msra.mxu0 0.0
    %390 = vmatpush.msra.mxu0 %v370
    %391 = vmatmul.f32.gmra.mxu0 %v373
    %v392 = vpop.f32.mrf.mxu0
    %v393 = vadd.f32 0.0, %v392
    %394 = vdwg.mxu0
    %395 = vrot.lane.b32.xlu0 %v106, 56
    %v396 = vpop.permute.xlu0 %395
    %v399 = vsel %vm111, %v368, 0
    %401 = vmatpush.msra.mxu0 0.0
    %402 = vmatpush.msra.mxu0 0.0
    %403 = vmatpush.msra.mxu0 0.0
    %404 = vmatpush.msra.mxu0 0.0
    %405 = vmatpush.msra.mxu0 0.0
    %406 = vmatpush.msra.mxu0 0.0
    %407 = vmatpush.msra.mxu0 0.0
    %408 = vmatpush.msra.mxu0 0.0
    %409 = vmatpush.msra.mxu0 0.0
    %410 = vmatpush.msra.mxu0 0.0
    %411 = vmatpush.msra.mxu0 0.0
    %412 = vmatpush.msra.mxu0 0.0
    %413 = vmatpush.msra.mxu0 0.0
    %414 = vmatpush.msra.mxu0 0.0
    %415 = vmatpush.msra.mxu0 0.0
    %416 = vmatpush.msra.mxu0 %v396
    %417 = vmatmul.f32.gmra.mxu0 %v399
    %v418 = vpop.f32.mrf.mxu0
    %v419 = vadd.f32 0.0, %v418
    %420 = vdwg.mxu0
    %423 = vrot.lane.b32.xlu0 %v393, 8
    %v424 = vpop.permute.xlu0 %423
    %425 = vrot.lane.b32.xlu0 %v419, 8
    %v426 = vpop.permute.xlu0 %425
    %vm429 = vcmask 130112
    %430 = vst.msk [vmem:[#allocation2] sm:$0xff] %vm429, %v424
    %431 = vst.msk [vmem:[#allocation2 + $0x8] sm:$0xff] %vm429, %v426
    %432 = vrot.lane.b32.xlu0 %v103, 112
    %v433 = vpop.permute.xlu0 %432
    %434 = vrot.lane.b32.xlu0 %v103, 80
    %v435 = vpop.permute.xlu0 %434
    %v436 = vsel %vm111, %v433, 0
    %v438 = vsel %vm111, %v435, 0
    %440 = vmatpush.xpose.msra.mxu0 0.0
    %441 = vmatpush.xpose.msra.mxu0 0.0
    %442 = vmatpush.xpose.msra.mxu0 0.0
    %443 = vmatpush.xpose.msra.mxu0 0.0
    %444 = vmatpush.xpose.msra.mxu0 0.0
    %445 = vmatpush.xpose.msra.mxu0 0.0
    %446 = vmatpush.xpose.msra.mxu0 0.0
    %447 = vmatpush.xpose.msra.mxu0 0.0
    %448 = vmatpush.xpose.msra.mxu0 0.0
    %449 = vmatpush.xpose.msra.mxu0 0.0
    %450 = vmatpush.xpose.msra.mxu0 0.0
    %451 = vmatpush.xpose.msra.mxu0 0.0
    %452 = vmatpush.xpose.msra.mxu0 0.0
    %453 = vmatpush.xpose.msra.mxu0 0.0
    %454 = vmatpush.xpose.msra.mxu0 0.0
    %455 = vmatpush.xpose.msra.mxu0 %v438
    %456 = vmatmul.f32.gmra.mxu0 %v436
    %v457 = vpop.f32.mrf.mxu0
    %v458 = vadd.f32 0.0, %v457
    %459 = vdwg.mxu0
    %460 = vrot.lane.b32.xlu0 %v106, 112
    %v461 = vpop.permute.xlu0 %460
    %462 = vrot.lane.b32.xlu0 %v106, 80
    %v463 = vpop.permute.xlu0 %462
    %v464 = vsel %vm111, %v461, 0
    %v466 = vsel %vm111, %v463, 0
    %468 = vmatpush.xpose.msra.mxu0 0.0
    %469 = vmatpush.xpose.msra.mxu0 0.0
    %470 = vmatpush.xpose.msra.mxu0 0.0
    %471 = vmatpush.xpose.msra.mxu0 0.0
    %472 = vmatpush.xpose.msra.mxu0 0.0
    %473 = vmatpush.xpose.msra.mxu0 0.0
    %474 = vmatpush.xpose.msra.mxu0 0.0
    %475 = vmatpush.xpose.msra.mxu0 0.0
    %476 = vmatpush.xpose.msra.mxu0 0.0
    %477 = vmatpush.xpose.msra.mxu0 0.0
    %478 = vmatpush.xpose.msra.mxu0 0.0
    %479 = vmatpush.xpose.msra.mxu0 0.0
    %480 = vmatpush.xpose.msra.mxu0 0.0
    %481 = vmatpush.xpose.msra.mxu0 0.0
    %482 = vmatpush.xpose.msra.mxu0 0.0
    %483 = vmatpush.xpose.msra.mxu0 %v466
    %484 = vmatmul.f32.gmra.mxu0 %v464
    %v485 = vpop.f32.mrf.mxu0
    %v486 = vadd.f32 0.0, %v485
    %487 = vdwg.mxu0
    %v488 = vsel %vm111, %v458, -inf
    %489 = vmax.xlane.f32.xlu0 %v488
    %v490 = vpop.xlane.xlu0 %489
    %v491 = vsel %vm111, %v486, -inf
    %492 = vmax.xlane.f32.xlu0 %v491
    %v493 = vpop.xlane.xlu0 %492
    %v494 = vsub.f32 %v458, %v490
    %v495 = vsub.f32 %v486, %v493
    %v496 = vmul.f32 %v494, 1.442695
    %v497 = vpow.pop %v496
    %v498 = vmul.f32 %v495, 1.442695
    %v499 = vpow.pop %v498
    %v500 = vsel %vm111, %v497, 0.0
    %501 = vadd.xlane.f32.xlu0 %v500
    %v502 = vpop.xlane.xlu0 %501
    %v503 = vsel %vm111, %v499, 0.0
    %504 = vadd.xlane.f32.xlu0 %v503
    %v505 = vpop.xlane.xlu0 %504
    %v506 = vrcp.pop %v502
    %v507 = vmul.f32 %v502, %v506
    %v508 = vsub.f32 1.0, %v507
    %v509 = vmul.f32 %v506, %v508
    %v510 = vadd.f32 %v506, %v509
    %vm511 = vweird.f32 %v502
    %vm512 = vweird.f32 %v506
    %vm513 = vmor %vm511, %vm512
    %v514 = vsel %vm513, %v506, %v510
    %v515 = vand.u32 2147483647, %v502
    %vm516 = vcmp.eq.f32.partialorder %v515, 8.507059e+37
    %v517 = vand.u32 %v502, 2147483648
    %v518 = vor.u32 1.1754944e-38, %v517
    %v519 = vsel %vm516, %v518, %v514
    %v520 = vmul.f32 %v497, %v519
    %v521 = vrcp.pop %v505
    %v522 = vmul.f32 %v505, %v521
    %v523 = vsub.f32 1.0, %v522
    %v524 = vmul.f32 %v521, %v523
    %v525 = vadd.f32 %v521, %v524
    %vm526 = vweird.f32 %v505
    %vm527 = vweird.f32 %v521
    %vm528 = vmor %vm526, %vm527
    %v529 = vsel %vm528, %v521, %v525
    %v530 = vand.u32 2147483647, %v505
    %vm531 = vcmp.eq.f32.partialorder %v530, 8.507059e+37
    %v532 = vand.u32 %v505, 2147483648
    %v533 = vor.u32 1.1754944e-38, %v532
    %v534 = vsel %vm531, %v533, %v529
    %v535 = vmul.f32 %v499, %v534
    %536 = vrot.lane.b32.xlu0 %v103, 48
    %v537 = vpop.permute.xlu0 %536
    %v540 = vsel %vm111, %v520, 0
    %542 = vmatpush.msra.mxu0 0.0
    %543 = vmatpush.msra.mxu0 0.0
    %544 = vmatpush.msra.mxu0 0.0
    %545 = vmatpush.msra.mxu0 0.0
    %546 = vmatpush.msra.mxu0 0.0
    %547 = vmatpush.msra.mxu0 0.0
    %548 = vmatpush.msra.mxu0 0.0
    %549 = vmatpush.msra.mxu0 0.0
    %550 = vmatpush.msra.mxu0 0.0
    %551 = vmatpush.msra.mxu0 0.0
    %552 = vmatpush.msra.mxu0 0.0
    %553 = vmatpush.msra.mxu0 0.0
    %554 = vmatpush.msra.mxu0 0.0
    %555 = vmatpush.msra.mxu0 0.0
    %556 = vmatpush.msra.mxu0 0.0
    %557 = vmatpush.msra.mxu0 %v537
    %558 = vmatmul.f32.gmra.mxu0 %v540
    %v559 = vpop.f32.mrf.mxu0
    %v560 = vadd.f32 0.0, %v559
    %561 = vdwg.mxu0
    %562 = vrot.lane.b32.xlu0 %v106, 48
    %v563 = vpop.permute.xlu0 %562
    %v566 = vsel %vm111, %v535, 0
    %568 = vmatpush.msra.mxu0 0.0
    %569 = vmatpush.msra.mxu0 0.0
    %570 = vmatpush.msra.mxu0 0.0
    %571 = vmatpush.msra.mxu0 0.0
    %572 = vmatpush.msra.mxu0 0.0
    %573 = vmatpush.msra.mxu0 0.0
    %574 = vmatpush.msra.mxu0 0.0
    %575 = vmatpush.msra.mxu0 0.0
    %576 = vmatpush.msra.mxu0 0.0
    %577 = vmatpush.msra.mxu0 0.0
    %578 = vmatpush.msra.mxu0 0.0
    %579 = vmatpush.msra.mxu0 0.0
    %580 = vmatpush.msra.mxu0 0.0
    %581 = vmatpush.msra.mxu0 0.0
    %582 = vmatpush.msra.mxu0 0.0
    %583 = vmatpush.msra.mxu0 %v563
    %584 = vmatmul.f32.gmra.mxu0 %v566
    %v585 = vpop.f32.mrf.mxu0
    %v586 = vadd.f32 0.0, %v585
    %587 = vdwg.mxu0
    %590 = vrot.lane.b32.xlu0 %v560, 16
    %v591 = vpop.permute.xlu0 %590
    %592 = vrot.lane.b32.xlu0 %v586, 16
    %v593 = vpop.permute.xlu0 %592
    %vm596 = vcmask 195712
    %597 = vst.msk [vmem:[#allocation2] sm:$0xff] %vm596, %v591
    %598 = vst.msk [vmem:[#allocation2 + $0x8] sm:$0xff] %vm596, %v593
    %599 = vrot.lane.b32.xlu0 %v103, 104
    %v600 = vpop.permute.xlu0 %599
    %601 = vrot.lane.b32.xlu0 %v103, 72
    %v602 = vpop.permute.xlu0 %601
    %v603 = vsel %vm111, %v600, 0
    %v605 = vsel %vm111, %v602, 0
    %607 = vmatpush.xpose.msra.mxu0 0.0
    %608 = vmatpush.xpose.msra.mxu0 0.0
    %609 = vmatpush.xpose.msra.mxu0 0.0
    %610 = vmatpush.xpose.msra.mxu0 0.0
    %611 = vmatpush.xpose.msra.mxu0 0.0
    %612 = vmatpush.xpose.msra.mxu0 0.0
    %613 = vmatpush.xpose.msra.mxu0 0.0
    %614 = vmatpush.xpose.msra.mxu0 0.0
    %615 = vmatpush.xpose.msra.mxu0 0.0
    %616 = vmatpush.xpose.msra.mxu0 0.0
    %617 = vmatpush.xpose.msra.mxu0 0.0
    %618 = vmatpush.xpose.msra.mxu0 0.0
    %619 = vmatpush.xpose.msra.mxu0 0.0
    %620 = vmatpush.xpose.msra.mxu0 0.0
    %621 = vmatpush.xpose.msra.mxu0 0.0
    %622 = vmatpush.xpose.msra.mxu0 %v605
    %623 = vmatmul.f32.gmra.mxu0 %v603
    %v624 = vpop.f32.mrf.mxu0
    %v625 = vadd.f32 0.0, %v624
    %626 = vdwg.mxu0
    %627 = vrot.lane.b32.xlu0 %v106, 104
    %v628 = vpop.permute.xlu0 %627
    %629 = vrot.lane.b32.xlu0 %v106, 72
    %v630 = vpop.permute.xlu0 %629
    %v631 = vsel %vm111, %v628, 0
    %v633 = vsel %vm111, %v630, 0
    %635 = vmatpush.xpose.msra.mxu0 0.0
    %636 = vmatpush.xpose.msra.mxu0 0.0
    %637 = vmatpush.xpose.msra.mxu0 0.0
    %638 = vmatpush.xpose.msra.mxu0 0.0
    %639 = vmatpush.xpose.msra.mxu0 0.0
    %640 = vmatpush.xpose.msra.mxu0 0.0
    %641 = vmatpush.xpose.msra.mxu0 0.0
    %642 = vmatpush.xpose.msra.mxu0 0.0
    %643 = vmatpush.xpose.msra.mxu0 0.0
    %644 = vmatpush.xpose.msra.mxu0 0.0
    %645 = vmatpush.xpose.msra.mxu0 0.0
    %646 = vmatpush.xpose.msra.mxu0 0.0
    %647 = vmatpush.xpose.msra.mxu0 0.0
    %648 = vmatpush.xpose.msra.mxu0 0.0
    %649 = vmatpush.xpose.msra.mxu0 0.0
    %650 = vmatpush.xpose.msra.mxu0 %v633
    %651 = vmatmul.f32.gmra.mxu0 %v631
    %v652 = vpop.f32.mrf.mxu0
    %v653 = vadd.f32 0.0, %v652
    %654 = vdwg.mxu0
    %v655 = vsel %vm111, %v625, -inf
    %656 = vmax.xlane.f32.xlu0 %v655
    %v657 = vpop.xlane.xlu0 %656
    %v658 = vsel %vm111, %v653, -inf
    %659 = vmax.xlane.f32.xlu0 %v658
    %v660 = vpop.xlane.xlu0 %659
    %v661 = vsub.f32 %v625, %v657
    %v662 = vsub.f32 %v653, %v660
    %v663 = vmul.f32 %v661, 1.442695
    %v664 = vpow.pop %v663
    %v665 = vmul.f32 %v662, 1.442695
    %v666 = vpow.pop %v665
    %v667 = vsel %vm111, %v664, 0.0
    %668 = vadd.xlane.f32.xlu0 %v667
    %v669 = vpop.xlane.xlu0 %668
    %v670 = vsel %vm111, %v666, 0.0
    %671 = vadd.xlane.f32.xlu0 %v670
    %v672 = vpop.xlane.xlu0 %671
    %v673 = vrcp.pop %v669
    %v674 = vmul.f32 %v669, %v673
    %v675 = vsub.f32 1.0, %v674
    %v676 = vmul.f32 %v673, %v675
    %v677 = vadd.f32 %v673, %v676
    %vm678 = vweird.f32 %v669
    %vm679 = vweird.f32 %v673
    %vm680 = vmor %vm678, %vm679
    %v681 = vsel %vm680, %v673, %v677
    %v682 = vand.u32 2147483647, %v669
    %vm683 = vcmp.eq.f32.partialorder %v682, 8.507059e+37
    %v684 = vand.u32 %v669, 2147483648
    %v685 = vor.u32 1.1754944e-38, %v684
    %v686 = vsel %vm683, %v685, %v681
    %v687 = vmul.f32 %v664, %v686
    %v688 = vrcp.pop %v672
    %v689 = vmul.f32 %v672, %v688
    %v690 = vsub.f32 1.0, %v689
    %v691 = vmul.f32 %v688, %v690
    %v692 = vadd.f32 %v688, %v691
    %vm693 = vweird.f32 %v672
    %vm694 = vweird.f32 %v688
    %vm695 = vmor %vm693, %vm694
    %v696 = vsel %vm695, %v688, %v692
    %v697 = vand.u32 2147483647, %v672
    %vm698 = vcmp.eq.f32.partialorder %v697, 8.507059e+37
    %v699 = vand.u32 %v672, 2147483648
    %v700 = vor.u32 1.1754944e-38, %v699
    %v701 = vsel %vm698, %v700, %v696
    %v702 = vmul.f32 %v666, %v701
    %703 = vrot.lane.b32.xlu0 %v103, 40
    %v704 = vpop.permute.xlu0 %703
    %v707 = vsel %vm111, %v687, 0
    %709 = vmatpush.msra.mxu0 0.0
    %710 = vmatpush.msra.mxu0 0.0
    %711 = vmatpush.msra.mxu0 0.0
    %712 = vmatpush.msra.mxu0 0.0
    %713 = vmatpush.msra.mxu0 0.0
    %714 = vmatpush.msra.mxu0 0.0
    %715 = vmatpush.msra.mxu0 0.0
    %716 = vmatpush.msra.mxu0 0.0
    %717 = vmatpush.msra.mxu0 0.0
    %718 = vmatpush.msra.mxu0 0.0
    %719 = vmatpush.msra.mxu0 0.0
    %720 = vmatpush.msra.mxu0 0.0
    %721 = vmatpush.msra.mxu0 0.0
    %722 = vmatpush.msra.mxu0 0.0
    %723 = vmatpush.msra.mxu0 0.0
    %724 = vmatpush.msra.mxu0 %v704
    %725 = vmatmul.f32.gmra.mxu0 %v707
    %v726 = vpop.f32.mrf.mxu0
    %v727 = vadd.f32 0.0, %v726
    %728 = vdwg.mxu0
    %729 = vrot.lane.b32.xlu0 %v106, 40
    %v730 = vpop.permute.xlu0 %729
    %v733 = vsel %vm111, %v702, 0
    %735 = vmatpush.msra.mxu0 0.0
    %736 = vmatpush.msra.mxu0 0.0
    %737 = vmatpush.msra.mxu0 0.0
    %738 = vmatpush.msra.mxu0 0.0
    %739 = vmatpush.msra.mxu0 0.0
    %740 = vmatpush.msra.mxu0 0.0
    %741 = vmatpush.msra.mxu0 0.0
    %742 = vmatpush.msra.mxu0 0.0
    %743 = vmatpush.msra.mxu0 0.0
    %744 = vmatpush.msra.mxu0 0.0
    %745 = vmatpush.msra.mxu0 0.0
    %746 = vmatpush.msra.mxu0 0.0
    %747 = vmatpush.msra.mxu0 0.0
    %748 = vmatpush.msra.mxu0 0.0
    %749 = vmatpush.msra.mxu0 0.0
    %750 = vmatpush.msra.mxu0 %v730
    %751 = vmatmul.f32.gmra.mxu0 %v733
    %v752 = vpop.f32.mrf.mxu0
    %v753 = vadd.f32 0.0, %v752
    %754 = vdwg.mxu0
    %757 = vrot.lane.b32.xlu0 %v727, 24
    %v758 = vpop.permute.xlu0 %757
    %759 = vrot.lane.b32.xlu0 %v753, 24
    %v760 = vpop.permute.xlu0 %759
    %vm763 = vcmask 261312
    %764 = vst.msk [vmem:[#allocation2] sm:$0xff] %vm763, %v758
    %765 = vst.msk [vmem:[#allocation2 + $0x8] sm:$0xff] %vm763, %v760
    %v766 = vld [vmem:[#allocation2] sm:$0xff]
    %v767 = vld [vmem:[#allocation2 + $0x8] sm:$0xff]
    %v768 = vld [vmem:[#allocation8] sm:$0xff]
    %v769 = vld [vmem:[#allocation8 + $0x8] sm:$0xff]
    %v770 = vld [vmem:[#allocation8 + $0x10] sm:$0xff]
    %v771 = vld [vmem:[#allocation8 + $0x18] sm:$0xff]
    %v772 = vld [vmem:[%s4] sm:$0x1]
    %v774 = vperm.slane %v772, 0
    %v777 = vsel %vm78, %v766, 0
    %v780 = vsel %vm78, %v767, 0
    %782 = vmatpush.msra.mxu0 0.0
    %783 = vmatpush.msra.mxu0 0.0
    %784 = vmatpush.msra.mxu0 0.0
    %785 = vmatpush.msra.mxu0 0.0
    %786 = vmatpush.msra.mxu0 0.0
    %787 = vmatpush.msra.mxu0 0.0
    %788 = vmatpush.msra.mxu0 0.0
    %789 = vmatpush.msra.mxu0 0.0
    %790 = vmatpush.msra.mxu0 0.0
    %791 = vmatpush.msra.mxu0 0.0
    %792 = vmatpush.msra.mxu0 0.0
    %793 = vmatpush.msra.mxu0 0.0
    %794 = vmatpush.msra.mxu0 %v771
    %795 = vmatpush.msra.mxu0 %v770
    %796 = vmatpush.msra.mxu0 %v769
    %797 = vmatpush.msra.mxu0 %v768
    %798 = vmatmul.f32.gmra.mxu0 %v777
    %v799 = vpop.f32.mrf.mxu0
    %v800 = vadd.f32 %v774, %v799
    %801 = vmatmul.f32.gmra.mxu0 %v780
    %v802 = vpop.f32.mrf.mxu0
    %v803 = vadd.f32 %v774, %v802
    %804 = vdwg.mxu0
    %805 = vst [vmem:[#allocation9] sm:$0xff] %v800
    %806 = vst [vmem:[#allocation9 + $0x8] sm:$0xff] %v803
    // Predicated region
    $region34: #{tpu_custom_call.1} parent=1 // pred_check
      _
    $region35: #{tpu_custom_call.1} parent=1 // pred_check_branch
      %808 = sbr.rel (0) target = $region37
    $region36: #{tpu_custom_call.1} parent=1 // pred_region
      %810 = vsyncadd [#allocation5], 0
      %s811 = sshll.u32 [#allocation9], 4
      %s812 = int_to_ptr.vmem [resolvable:$true] %s811
      %s813 = sshll.u32 %s5, 4
      %s814 = int_to_ptr.hbm [resolvable:$true] %s813
      %819 = dma.vmem_to_hbm [thread:$0]  %s812, 256, %s814, [#allocation5], 128, 128, 8
    $region37: #{tpu_custom_call.1} parent=1 // pred_fallthru
      _
    // Predicated region
    $region38: #{tpu_custom_call.1} parent=1 // pred_check
      _
    $region39: #{tpu_custom_call.1} parent=1 // pred_check_branch
      %821 = sbr.rel (0) target = $region41
    $region40: #{tpu_custom_call.1} parent=1 // pred_region
      %823 = dma.done [#allocation5], 256
    $region41: #{tpu_custom_call.1} parent=1 // pred_fallthru
      _
    %824 = vsyncpa [#allocation4], 1
    %825 = vsyncpa [#allocation7], 1
    %826 = vsyncpa [#allocation5], 1

</llo_original>
